<compile_context>
chip_gen: v6e
topology: v6e:2x2x1
jax: 0.10.0
libtpu: 0.0.40
codegen_flags: <defaults>
</compile_context>

<pallas_src>
import functools
import math

import numpy as np
import jax
import jax.numpy as jnp
from jax.experimental import pallas as pl
from jax.experimental.pallas import tpu as pltpu

EPSILON = float(np.finfo(np.float32).eps)  # matches torch.finfo(torch.float32).eps


def _lsd_kernel(n_freq, n_half, ref_ref, est_ref, dft_ref, out_ref):
    ref = ref_ref[0]                          # (W, tile_t) bf16 frames (un-windowed)
    est = est_ref[0]
    dft = dft_ref[...]                        # (Rp, W) bf16: [w*cos | w*sin | nyq | 0]

    # One fused MXU matmul per input.  Row layout of the result:
    #   rows [0, n_half)          -> real parts of bins k = 0..n_half-1
    #   rows [n_half, 2*n_half)   -> imag parts (sin k=0 row is identically 0)
    #   row  2*n_half             -> Nyquist real part (imag is 0)
    ry = jnp.dot(dft, ref, preferred_element_type=jnp.float32)   # (Rp, tile_t)
    ey = jnp.dot(dft, est, preferred_element_type=jnp.float32)

    r_re = ry[:n_half, :]
    r_im = ry[n_half:2 * n_half, :]
    e_re = ey[:n_half, :]
    e_im = ey[n_half:2 * n_half, :]
    r_pow = r_re * r_re + r_im * r_im          # (n_half, tile_t)
    e_pow = e_re * e_re + e_im * e_im

    r_ny = ry[2 * n_half:2 * n_half + 1, :]    # (1, tile_t)
    e_ny = ey[2 * n_half:2 * n_half + 1, :]

    # log10(clamp) - log10(clamp): same EUP count as log(ratio)+recip, fewer
    # VPU FMAs than an exact divide.  Padded frame columns give d == 0.
    d = (jnp.log10(jnp.maximum(r_pow, EPSILON))
         - jnp.log10(jnp.maximum(e_pow, EPSILON)))
    d_ny = (jnp.log10(jnp.maximum(r_ny * r_ny, EPSILON))
            - jnp.log10(jnp.maximum(e_ny * e_ny, EPSILON)))

    ssq = jnp.sum(d * d, axis=0, keepdims=True) + d_ny * d_ny    # (1, tile_t)
    lsd = jnp.sqrt(ssq * (1.0 / float(n_freq)))
    out_ref[...] = lsd.reshape(out_ref.shape)                    # lane-dense store


def _hann_window(win_len):
    # torch.hann_window default is periodic=True
    n = np.arange(win_len, dtype=np.float64)
    return 0.5 - 0.5 * np.cos(2.0 * np.pi * n / win_len)


def _round_up(x, m):
    return ((x + m - 1) // m) * m


def lsd_pallas(ref_wavs, est_wavs, fft_len=256, win_inc=64, win_len=256,
               reduction="mean", tile_t_cap=2048, compute_dtype=jnp.bfloat16):
    # TODO(synk): only win_len == fft_len supported (torch would center-pad the window).
    assert win_len == fft_len, "kernel assumes win_len == fft_len"
    assert fft_len % 16 == 0
    B, L = ref_wavs.shape
    W = fft_len
    hop = win_inc
    pad = fft_len // 2
    T = 1 + (L + 2 * pad - fft_len) // hop          # frames per batch (torch center=True)

    Fh = fft_len // 2                               # paired cos/sin bins k = 0..Fh-1
    F = Fh + 1                                      # onesided rFFT bins (incl. Nyquist)

    # ---- tile sizing: VMEM-budgeted cap, bounded padding waste, >=2 grid steps ----
    cap = min(int(tile_t_cap), max(128, ((512 * 1024) // W) // 128 * 128))
    n_t = max(1, math.ceil(T / cap))
    if B * n_t == 1 and T > 128:
        n_t = 2                                     # keep both v7x TensorCores busy
    tile_t = _round_up(math.ceil(T / n_t), 128)     # frames on the lane axis
    Tp = n_t * tile_t

    # ---- framing (plain-JAX glue), frames laid out as (B, W, Tp) ----
    # Cast to the compute dtype BEFORE framing: halves the gather/kernel HBM traffic.
    # Padded tail frames just repeat the last frame (valid data, discarded later).
    # TODO(synk): move framing into the kernel (DMA contiguous wave slabs with
    # memory_space=pl.ANY and assemble hop-shifted frames in VMEM) to cut the
    # ~4x-overlapped frame HBM traffic, which dominates on v5e/v6e.
    ref_p = jnp.pad(ref_wavs.astype(compute_dtype), ((0, 0), (pad, pad)), mode="reflect")
    est_p = jnp.pad(est_wavs.astype(compute_dtype), ((0, 0), (pad, pad)), mode="reflect")
    t_idx = np.minimum(np.arange(Tp), T - 1)
    col = t_idx[None, :] * hop + np.arange(W)[:, None]     # (W, Tp) host constant
    ref_frames = ref_p[:, col]                              # (B, W, Tp)
    est_frames = est_p[:, col]

    # ---- window-folded DFT matrix: rows [w*cos_k | w*sin_k | nyquist | zero-pad] ----
    window = _hann_window(win_len)
    Rp = _round_up(2 * Fh + 1, 16)
    n = np.arange(W, dtype=np.float64)
    k = np.arange(Fh, dtype=np.float64)
    ang = 2.0 * np.pi * np.outer(k, n) / float(fft_len)
    dft_np = np.zeros((Rp, W), dtype=np.float64)
    dft_np[:Fh] = np.cos(ang) * window[None, :]             # (x*w) @ C == x @ (diag(w) C)
    dft_np[Fh:2 * Fh] = np.sin(ang) * window[None, :]       # sign irrelevant after squaring
    dft_np[2 * Fh] = window * np.cos(np.pi * np.arange(W))  # Nyquist: w_n * (-1)^n
    dft = jnp.asarray(dft_np, dtype=compute_dtype)

    out = pl.pallas_call(
        functools.partial(_lsd_kernel, F, Fh),
        out_shape=jax.ShapeDtypeStruct((B, n_t, 1, tile_t), jnp.float32),
        grid_spec=pltpu.PrefetchScalarGridSpec(
            num_scalar_prefetch=0,
            grid=(B, n_t),
            in_specs=[
                pl.BlockSpec((1, W, tile_t), lambda b, i: (b, 0, i)),   # ref frames
                pl.BlockSpec((1, W, tile_t), lambda b, i: (b, 0, i)),   # est frames
                pl.BlockSpec((Rp, W), lambda b, i: (0, 0)),             # fused DFT matrix
            ],
            out_specs=pl.BlockSpec((1, 1, 1, tile_t), lambda b, i: (b, i, 0, 0)),
        ),
        compiler_params=pltpu.CompilerParams(
            dimension_semantics=("parallel", "parallel"),
            vmem_limit_bytes=32 * 1024 * 1024),
    )(ref_frames, est_frames, dft)

    per_frame = out.reshape(B, Tp)[:, :T]       # sqrt(mean_f diff^2) per frame
    lsd_b = per_frame.mean(axis=1)              # mean over time frames
    if reduction == "mean":
        return lsd_b.mean()
    elif reduction == "batch":
        return lsd_b
    raise ValueError(reduction)


def _lsd_numpy_ref(ref, est, fft_len, hop, win_len):
    """Pure-numpy reference (mirrors torch.stft semantics with rFFT)."""
    window = _hann_window(win_len)

    def stft_pow(x):
        x = np.asarray(x, dtype=np.float64)
        pad = fft_len // 2
        xp = np.pad(x, ((0, 0), (pad, pad)), mode="reflect")
        T = 1 + (x.shape[1] + 2 * pad - fft_len) // hop
        frames = np.stack([xp[:, t * hop:t * hop + fft_len] for t in range(T)], axis=1)
        spec = np.fft.rfft(frames * window[None, None, :], n=fft_len, axis=-1)
        return np.abs(spec) ** 2  # (B, T, F)

    rp = np.maximum(stft_pow(ref), EPSILON)
    ep = np.maximum(stft_pow(est), EPSILON)
    d = np.log10(rp) - np.log10(ep)
    lsd = np.sqrt((d ** 2).mean(axis=-1)).mean(axis=-1)  # (B,)
    return float(lsd.mean())


if __name__ == "__main__":
    # small shapes: batch=2, signal length=1024, fft_len=win_len=256, hop=64
    key = jax.random.PRNGKey(0)
    k_ref, k_est = jax.random.split(key)
    B, L = 2, 1024
    ref_wavs = jax.random.normal(k_ref, (B, L), dtype=jnp.float32)
    est_wavs = 0.7 * ref_wavs + 0.3 * jax.random.normal(k_est, (B, L), dtype=jnp.float32)

    out = lsd_pallas(ref_wavs, est_wavs, fft_len=256, win_inc=64, win_len=256,
                     reduction="mean")
    out = jax.block_until_ready(out)

    expected = _lsd_numpy_ref(np.asarray(ref_wavs), np.asarray(est_wavs),
                              fft_len=256, hop=64, win_len=256)
    np.testing.assert_allclose(float(out), expected, rtol=2e-2, atol=2e-3)

    print("KERNEL_OK")
</pallas_src>

<mosaic_0001>
module attributes {stable_mosaic.version = 11 : i64} {
  func.func @_lsd_kernel(%arg0: i32, %arg1: i32, %arg2: memref<1x256x128xbf16, #tpu.memory_space<vmem>>, %arg3: memref<1x256x128xbf16, #tpu.memory_space<vmem>>, %arg4: memref<272x256xbf16, #tpu.memory_space<vmem>>, %arg5: memref<1x1x1x128xf32, #tpu.memory_space<vmem>>) attributes {dimension_semantics = [#tpu.dimension_semantics<parallel>, #tpu.dimension_semantics<parallel>], iteration_bounds = array<i64: 2, 1>, scalar_prefetch = 0 : i64, scratch_operands = 0 : i64, tpu.core_type = #tpu.core_type<tc>, window_params = [{transform_indices = @transform_0, window_bounds = array<i64: 1, 256, 128>}, {transform_indices = @transform_1, window_bounds = array<i64: 1, 256, 128>}, {pipeline_mode = #tpu.pipeline_mode<synchronous>, transform_indices = @transform_2, window_bounds = array<i64: 272, 256>}, {transform_indices = @transform_3, window_bounds = array<i64: 1, 1, 1, 128>}]} {
    %c0 = arith.constant 0 : index
    %c0_0 = arith.constant 0 : index
    %c0_1 = arith.constant 0 : index
    %0 = vector.load %arg2[%c0, %c0_0, %c0_1] : memref<1x256x128xbf16, #tpu.memory_space<vmem>>, vector<1x256x128xbf16>
    %1 = vector.shape_cast %0 : vector<1x256x128xbf16> to vector<256x128xbf16>
    %c0_2 = arith.constant 0 : index
    %c0_3 = arith.constant 0 : index
    %c0_4 = arith.constant 0 : index
    %2 = vector.load %arg3[%c0_2, %c0_3, %c0_4] : memref<1x256x128xbf16, #tpu.memory_space<vmem>>, vector<1x256x128xbf16>
    %3 = vector.shape_cast %2 : vector<1x256x128xbf16> to vector<256x128xbf16>
    %c0_5 = arith.constant 0 : index
    %c0_6 = arith.constant 0 : index
    %4 = vector.load %arg4[%c0_5, %c0_6] : memref<272x256xbf16, #tpu.memory_space<vmem>>, vector<272x256xbf16>
    %cst = arith.constant dense<0.000000e+00> : vector<272x128xf32>
    %5 = tpu.matmul %4, %1, %cst {dimension_numbers = #tpu.dot_dimension_numbers<[1], [0], [0], [1], [0, 0, 1, 1], [], []>} : vector<272x256xbf16>, vector<256x128xbf16>, vector<272x128xf32> -> vector<272x128xf32>
    %cst_7 = arith.constant dense<0.000000e+00> : vector<272x128xf32>
    %6 = tpu.matmul %4, %3, %cst_7 {dimension_numbers = #tpu.dot_dimension_numbers<[1], [0], [0], [1], [0, 0, 1, 1], [], []>} : vector<272x256xbf16>, vector<256x128xbf16>, vector<272x128xf32> -> vector<272x128xf32>
    %7 = vector.extract_strided_slice %5 {offsets = [0, 0], sizes = [128, 128], strides = [1, 1]} : vector<272x128xf32> to vector<128x128xf32>
    %8 = vector.extract_strided_slice %5 {offsets = [128, 0], sizes = [128, 128], strides = [1, 1]} : vector<272x128xf32> to vector<128x128xf32>
    %9 = vector.extract_strided_slice %6 {offsets = [0, 0], sizes = [128, 128], strides = [1, 1]} : vector<272x128xf32> to vector<128x128xf32>
    %10 = vector.extract_strided_slice %6 {offsets = [128, 0], sizes = [128, 128], strides = [1, 1]} : vector<272x128xf32> to vector<128x128xf32>
    %11 = arith.mulf %7, %7 : vector<128x128xf32>
    %12 = arith.mulf %8, %8 : vector<128x128xf32>
    %13 = arith.addf %11, %12 : vector<128x128xf32>
    %14 = arith.mulf %9, %9 : vector<128x128xf32>
    %15 = arith.mulf %10, %10 : vector<128x128xf32>
    %16 = arith.addf %14, %15 : vector<128x128xf32>
    %17 = vector.extract_strided_slice %5 {offsets = [256, 0], sizes = [1, 128], strides = [1, 1]} : vector<272x128xf32> to vector<1x128xf32>
    %18 = vector.extract_strided_slice %6 {offsets = [256, 0], sizes = [1, 128], strides = [1, 1]} : vector<272x128xf32> to vector<1x128xf32>
    %cst_8 = arith.constant 1.1920929E-7 : f32
    %19 = vector.broadcast %cst_8 : f32 to vector<128x128xf32>
    %20 = arith.maximumf %13, %19 : vector<128x128xf32>
    %21 = math.log %20 : vector<128x128xf32>
    %cst_9 = arith.constant 0.434294492 : f32
    %22 = vector.broadcast %cst_9 : f32 to vector<128x128xf32>
    %23 = arith.mulf %21, %22 : vector<128x128xf32>
    %cst_10 = arith.constant 1.1920929E-7 : f32
    %24 = vector.broadcast %cst_10 : f32 to vector<128x128xf32>
    %25 = arith.maximumf %16, %24 : vector<128x128xf32>
    %26 = math.log %25 : vector<128x128xf32>
    %cst_11 = arith.constant 0.434294492 : f32
    %27 = vector.broadcast %cst_11 : f32 to vector<128x128xf32>
    %28 = arith.mulf %26, %27 : vector<128x128xf32>
    %29 = arith.subf %23, %28 : vector<128x128xf32>
    %30 = arith.mulf %17, %17 : vector<1x128xf32>
    %cst_12 = arith.constant 1.1920929E-7 : f32
    %31 = vector.broadcast %cst_12 : f32 to vector<1x128xf32>
    %32 = arith.maximumf %30, %31 : vector<1x128xf32>
    %33 = math.log %32 : vector<1x128xf32>
    %cst_13 = arith.constant 0.434294492 : f32
    %34 = vector.broadcast %cst_13 : f32 to vector<1x128xf32>
    %35 = arith.mulf %33, %34 : vector<1x128xf32>
    %36 = arith.mulf %18, %18 : vector<1x128xf32>
    %cst_14 = arith.constant 1.1920929E-7 : f32
    %37 = vector.broadcast %cst_14 : f32 to vector<1x128xf32>
    %38 = arith.maximumf %36, %37 : vector<1x128xf32>
    %39 = math.log %38 : vector<1x128xf32>
    %cst_15 = arith.constant 0.434294492 : f32
    %40 = vector.broadcast %cst_15 : f32 to vector<1x128xf32>
    %41 = arith.mulf %39, %40 : vector<1x128xf32>
    %42 = arith.subf %35, %41 : vector<1x128xf32>
    %43 = arith.mulf %29, %29 : vector<128x128xf32>
    %cst_16 = arith.constant dense<0.000000e+00> : vector<128xf32>
    %44 = vector.multi_reduction <add>, %43, %cst_16 [0] : vector<128x128xf32> to vector<128xf32>
    %45 = vector.shape_cast %44 : vector<128xf32> to vector<1x128xf32>
    %46 = arith.mulf %42, %42 : vector<1x128xf32>
    %47 = arith.addf %45, %46 : vector<1x128xf32>
    %cst_17 = arith.constant 0.00775193795 : f32
    %48 = vector.broadcast %cst_17 : f32 to vector<1x128xf32>
    %49 = arith.mulf %47, %48 : vector<1x128xf32>
    %50 = math.sqrt %49 : vector<1x128xf32>
    %51 = vector.shape_cast %50 : vector<1x128xf32> to vector<1x1x1x128xf32>
    %c0_18 = arith.constant 0 : index
    %c0_19 = arith.constant 0 : index
    %c0_20 = arith.constant 0 : index
    %c0_21 = arith.constant 0 : index
    %52 = vector.load %arg5[%c0_18, %c0_19, %c0_20, %c0_21] : memref<1x1x1x128xf32, #tpu.memory_space<vmem>>, vector<1x1x1x128xf32>
    tpu.vector_store %arg5[%c0_18, %c0_19, %c0_20, %c0_21], %51 {strides = array<i32>} : memref<1x1x1x128xf32, #tpu.memory_space<vmem>>, vector<1x1x1x128xf32>,
    return
  }
  func.func @transform_0(%arg0: i32, %arg1: i32) -> (i32, i32, i32) {
    %c0_i32 = arith.constant 0 : i32
    %c0_i32_0 = arith.constant 0 : i32
    return %arg0, %c0_i32, %arg1 : i32, i32, i32
  }
  func.func @transform_1(%arg0: i32, %arg1: i32) -> (i32, i32, i32) {
    %c0_i32 = arith.constant 0 : i32
    %c0_i32_0 = arith.constant 0 : i32
    return %arg0, %c0_i32, %arg1 : i32, i32, i32
  }
  func.func @transform_2(%arg0: i32, %arg1: i32) -> (i32, i32) {
    %c0_i32 = arith.constant 0 : i32
    %c0_i32_0 = arith.constant 0 : i32
    %c0_i32_1 = arith.constant 0 : i32
    return %c0_i32, %c0_i32_0 : i32, i32
  }
  func.func @transform_3(%arg0: i32, %arg1: i32) -> (i32, i32, i32, i32) {
    %c0_i32 = arith.constant 0 : i32
    %c0_i32_0 = arith.constant 0 : i32
    %c0_i32_1 = arith.constant 0 : i32
    return %arg0, %arg1, %c0_i32, %c0_i32_0 : i32, i32, i32, i32
  }
}

</mosaic_0001>

<llo_original>
// kernel: tpu_custom_call.1
$region0: #{tpu_custom_call.1}
  #allocation0 [shape = 'u32[]', space=smem, size = 0x4, offset = 0x4, fixed_abs, tag = 'smem constant byte address 0x4 - core index']
  #allocation1 [shape = 'u32[144,128]{1,0:T(1,128)}', space=vmem, size = 0x12000, scoped, tag = 'internal scratch']
  %s0 = inlined_call_operand.hbm [shape: bf16[2,256,128], index: 0, kind: input, shape index: {}]
  %s1 = inlined_call_operand.hbm [shape: bf16[2,256,128], index: 1, kind: input, shape index: {}]
  %s2 = inlined_call_operand.hbm [shape: bf16[272,256], index: 2, kind: input, shape index: {}]
  %s3 = inlined_call_operand.hbm [shape: f32[2,1,1,128], index: 3, kind: output, shape index: {}]
  %s4 = sld [smem:[#allocation0]]
  $region57: #{tpu_custom_call.1} parent=0
    _
  %s6 = ssub.s32 1, %s4
  %s7 = scalar_select 0, %s6, %s4
  $region1: #{tpu_custom_call.1} parent=0
    #allocation2 [shape = 'u8[131072]{0}', space=vmem, size = 0x20000, scoped, tag = 'input window, operand 0']
    #allocation3 [shape = 's32[2]{0}', space=sflag, size = 0x8, scoped, tag = 'scoped memory for tpu_custom_call.1']
    #allocation4 [shape = 's32[2]{0}', space=sflag, size = 0x8, scoped, tag = 'scoped memory for tpu_custom_call.1']
    #allocation5 [shape = 'u8[131072]{0}', space=vmem, size = 0x20000, scoped, tag = 'input window, operand 1']
    #allocation6 [shape = 's32[2]{0}', space=sflag, size = 0x8, scoped, tag = 'scoped memory for tpu_custom_call.1']
    #allocation7 [shape = 'u8[139264]{0}', space=vmem, size = 0x22000, scoped, tag = 'input window, operand 2, single buffered']
    #allocation8 [shape = 'u8[1024]{0}', space=vmem, size = 0x400, scoped, tag = 'output window, operand 0']
    %8 = vsyncpa [#allocation3], 0
    %s9 = scalar_lea.sflag [#allocation3], 1
    %10 = vsyncpa %s9, 0
    %11 = vsyncpa [#allocation6], 0
    %s12 = scalar_lea.sflag [#allocation6], 1
    %13 = vsyncpa %s12, 0
    %14 = vsyncpa [#allocation4], 0
    %s15 = scalar_lea.sflag [#allocation4], 1
    %16 = vsyncpa %s15, 0
    loop: start=0, step=1, limit=4
    $region2: #{tpu_custom_call.1} parent=1 // loop_pre_header
      _
    $region3: #{tpu_custom_call.1} parent=1 // loop_header
      %s18 = sphi 0, %s22
      %p19 = scmp.ge.s32.totalorder %s18, 4
      %s25 = sphi 0, %s37
      %s26 = sphi 0, %s33
      %s27 = sphi 0, %s25
      %s28 = sphi 0, %s26
      %s29 = sphi 0, %s27
      %s30 = sphi 0, %s28
      %s42 = sphi 0, %s44
      %s45 = sphi 0, %s42
      %s46 = sphi 0, %s45
      %s62 = sphi 0, %s46
      %s70 = sphi 0, %s72
      %s73 = sphi 0, %s70
      %s74 = sphi 0, %s73
      %s90 = sphi 0, %s74
      %s94 = sphi 0, %s94
      %s96 = sphi 0, %s94
      %s97 = sphi 0, %s96
      %s111 = sphi 0, %s97
      %s119 = sphi 0, %s121
      %s122 = sphi 0, %s119
      %s123 = sphi 0, %s122
      %s139 = sphi 0, %s123
    $region4: #{tpu_custom_call.1} parent=1 // loop_header_branch
      %21 = sbr.rel (%p19) target = $region8
    $region5: #{tpu_custom_call.1} parent=1 // loop_body
      %s23 = ssub.s32 %s18, 1
      %s24 = ssub.s32 %s18, 2
      %s31 = sadd.s32 1, %s26
      %p32 = scmp.ge.s32.totalorder %s31, 1
      %s33 = scalar_select %p32, 0, %s31
      %s34 = sadd.s32 1, %s25
      %s35 = scalar_select %p32, %s34, %s25
      %p36 = scmp.ge.s32.totalorder %s35, 2
      %s37 = scalar_select %p36, 0, %s35
      %s38 = ssub.s32 %s25, %s37
      %s39 = ssub.s32 %s26, %s33
      %s40 = sor.u32 %s38, %s39
      %p41 = scmp.eq.s32.totalorder %s40, 0
      %s43 = sadd.s32 %s42, 1
      %s44 = scalar_select %p41, %s42, %s43
      %p47 = pneg %p41
      %p48 = scmp.eq.s32.totalorder %s18, 1
      %p49 = por %p47, %p48
      %p50 = scmp.ne.s32.totalorder %s42, %s45
      %p51 = scmp.eq.s32.totalorder %s18, 0
      %p52 = por %p50, %p51
      %p53 = scmp.ne.s32.totalorder %s42, %s45
      %p54 = scmp.eq.s32.totalorder %s23, 1
      %p55 = por %p53, %p54
      %p56 = scmp.ne.s32.totalorder %s45, %s46
      %p57 = scmp.eq.s32.totalorder %s23, 0
      %p58 = por %p56, %p57
      %p59 = scmp.ne.s32.totalorder %s45, %s46
      %p60 = scmp.eq.s32.totalorder %s24, 1
      %p61 = por %p59, %p60
      %p63 = scmp.ne.s32.totalorder %s46, %s62
      %p64 = scmp.eq.s32.totalorder %s24, 0
      %p65 = por %p63, %p64
      %s66 = ssub.s32 %s25, %s37
      %s67 = ssub.s32 %s26, %s33
      %s68 = sor.u32 %s66, %s67
      %p69 = scmp.eq.s32.totalorder %s68, 0
      %s71 = sadd.s32 %s70, 1
      %s72 = scalar_select %p69, %s70, %s71
      %p75 = pneg %p69
      %p76 = scmp.eq.s32.totalorder %s18, 1
      %p77 = por %p75, %p76
      %p78 = scmp.ne.s32.totalorder %s70, %s73
      %p79 = scmp.eq.s32.totalorder %s18, 0
      %p80 = por %p78, %p79
      %p81 = scmp.ne.s32.totalorder %s70, %s73
      %p82 = scmp.eq.s32.totalorder %s23, 1
      %p83 = por %p81, %p82
      %p84 = scmp.ne.s32.totalorder %s73, %s74
      %p85 = scmp.eq.s32.totalorder %s23, 0
      %p86 = por %p84, %p85
      %p87 = scmp.ne.s32.totalorder %s73, %s74
      %p88 = scmp.eq.s32.totalorder %s24, 1
      %p89 = por %p87, %p88
      %p91 = scmp.ne.s32.totalorder %s74, %s90
      %p92 = scmp.eq.s32.totalorder %s24, 0
      %p93 = por %p91, %p92
      %s95 = sadd.s32 %s94, 1
      %p98 = scmp.eq.s32.totalorder %s18, 1
      %p99 = scmp.ne.s32.totalorder %s94, %s96
      %p100 = scmp.eq.s32.totalorder %s18, 0
      %p101 = por %p99, %p100
      %p102 = scmp.ne.s32.totalorder %s94, %s96
      %p103 = scmp.eq.s32.totalorder %s23, 1
      %p104 = por %p102, %p103
      %p105 = scmp.ne.s32.totalorder %s96, %s97
      %p106 = scmp.eq.s32.totalorder %s23, 0
      %p107 = por %p105, %p106
      %p108 = scmp.ne.s32.totalorder %s96, %s97
      %p109 = scmp.eq.s32.totalorder %s24, 1
      %p110 = por %p108, %p109
      %p112 = scmp.ne.s32.totalorder %s97, %s111
      %p113 = scmp.eq.s32.totalorder %s24, 0
      %p114 = por %p112, %p113
      %s115 = ssub.s32 %s25, %s37
      %s116 = ssub.s32 %s26, %s33
      %s117 = sor.u32 %s115, %s116
      %p118 = scmp.eq.s32.totalorder %s117, 0
      %s120 = sadd.s32 %s119, 1
      %s121 = scalar_select %p118, %s119, %s120
      %p124 = pneg %p118
      %p125 = scmp.eq.s32.totalorder %s18, 1
      %p126 = por %p124, %p125
      %p127 = scmp.ne.s32.totalorder %s119, %s122
      %p128 = scmp.eq.s32.totalorder %s18, 0
      %p129 = por %p127, %p128
      %p130 = scmp.ne.s32.totalorder %s119, %s122
      %p131 = scmp.eq.s32.totalorder %s23, 1
      %p132 = por %p130, %p131
      %p133 = scmp.ne.s32.totalorder %s122, %s123
      %p134 = scmp.eq.s32.totalorder %s23, 0
      %p135 = por %p133, %p134
      %p136 = scmp.ne.s32.totalorder %s122, %s123
      %p137 = scmp.eq.s32.totalorder %s24, 1
      %p138 = por %p136, %p137
      %p140 = scmp.ne.s32.totalorder %s123, %s139
      %p141 = scmp.eq.s32.totalorder %s24, 0
      %p142 = por %p140, %p141
      %p143 = scmp.le.s32.totalorder 1, %s18
      %p144 = scmp.lt.s32.totalorder %s18, 3
      %p145 = pnand %p143, %p144
      %p146 = pneg %p145
      // Predicated region
      $region9: #{tpu_custom_call.1} parent=5 // pred_check
        _
      $region10: #{tpu_custom_call.1} parent=5 // pred_check_branch
        %148 = sbr.rel (%p145) target = $region12
      $region11: #{tpu_custom_call.1} parent=5 // pred_region
        %s149 = ssub.s32 %s18, 1
        // Predicated region
        $region13: #{tpu_custom_call.1} parent=11 // pred_check
          %p150 = pneg %p107
        $region14: #{tpu_custom_call.1} parent=11 // pred_check_branch
          %152 = sbr.rel (%p150) target = $region16
        $region15: #{tpu_custom_call.1} parent=11 // pred_region
          %s154 = ssub.s32 4352, 4352
          %155 = vsyncadd [#allocation6], %s154
          %s156 = sshll.u32 [#allocation7], 4
          %s157 = int_to_ptr.vmem [resolvable:$true] %s156
          %162 = dma.hbm_to_vmem [thread:$0]  %s2, 4352, %s157, [#allocation6], 128, 128, 8
        $region16: #{tpu_custom_call.1} parent=11 // pred_fallthru
          _
      $region12: #{tpu_custom_call.1} parent=5 // pred_fallthru
        _
      %p163 = scmp.lt.s32.totalorder %s18, 2
      // Predicated region
      $region17: #{tpu_custom_call.1} parent=5 // pred_check
        %p164 = pneg %p163
      $region18: #{tpu_custom_call.1} parent=5 // pred_check_branch
        %166 = sbr.rel (%p164) target = $region20
      $region19: #{tpu_custom_call.1} parent=5 // pred_region
        // Predicated region
        $region21: #{tpu_custom_call.1} parent=19 // pred_check
          %p167 = pneg %p52
        $region22: #{tpu_custom_call.1} parent=19 // pred_check_branch
          %169 = sbr.rel (%p167) target = $region24
        $region23: #{tpu_custom_call.1} parent=19 // pred_region
          %s170 = sand.u32 %s42, 1
          %s171 = scalar_lea.sflag [#allocation3], %s170
          %s172 = sand.u32 %s42, 1
          %s173 = smul.addr %s172, 128
          %s174 = scalar_lea.vmem [#allocation2], %s173
          %s176 = ssub.s32 2048, 2048
          %177 = vsyncadd %s171, %s176
          %s178 = smul.addr %s25, 32
          %s179 = sadd.s32 %s26, %s178
          %s180 = smul.addr %s179, 64
          %s181 = scalar_lea.hbm %s0, %s180
          %s182 = sshll.u32 %s174, 4
          %s183 = int_to_ptr.vmem [resolvable:$true] %s182
          %188 = dma.hbm_to_vmem [thread:$0]  %s181, 2048, %s183, %s171, 64, 64, 4
        $region24: #{tpu_custom_call.1} parent=19 // pred_fallthru
          _
        // Predicated region
        $region25: #{tpu_custom_call.1} parent=19 // pred_check
          %p189 = pneg %p80
        $region26: #{tpu_custom_call.1} parent=19 // pred_check_branch
          %191 = sbr.rel (%p189) target = $region28
        $region27: #{tpu_custom_call.1} parent=19 // pred_region
          %s192 = sand.u32 %s18, 1
          %s193 = scalar_lea.sflag [#allocation6], %s192
          %s194 = sand.u32 %s70, 1
          %s195 = smul.addr %s194, 128
          %s196 = scalar_lea.vmem [#allocation5], %s195
          %s198 = ssub.s32 2048, 2048
          %199 = vsyncadd %s193, %s198
          %s200 = smul.addr %s25, 32
          %s201 = sadd.s32 %s26, %s200
          %s202 = smul.addr %s201, 64
          %s203 = scalar_lea.hbm %s1, %s202
          %s204 = sshll.u32 %s196, 4
          %s205 = int_to_ptr.vmem [resolvable:$true] %s204
          %210 = dma.hbm_to_vmem [thread:$0]  %s203, 2048, %s205, %s193, 64, 64, 4
        $region28: #{tpu_custom_call.1} parent=19 // pred_fallthru
          _
      $region20: #{tpu_custom_call.1} parent=5 // pred_fallthru
        _
      %p211 = scmp.le.s32.totalorder 1, %s18
      %p212 = scmp.lt.s32.totalorder %s18, 3
      %p213 = pnand %p211, %p212
      %p214 = pneg %p213
      // Predicated region
      $region29: #{tpu_custom_call.1} parent=5 // pred_check
        _
      $region30: #{tpu_custom_call.1} parent=5 // pred_check_branch
        %216 = sbr.rel (%p213) target = $region32
      $region31: #{tpu_custom_call.1} parent=5 // pred_region
        %s217 = ssub.s32 %s18, 1
        %s218 = sand.u32 %s45, 1
        %s219 = scalar_lea.sflag [#allocation3], %s218
        %s220 = sand.u32 %s45, 1
        %s221 = smul.addr %s220, 128
        %s222 = scalar_lea.vmem [#allocation2], %s221
        // Predicated region
        $region33: #{tpu_custom_call.1} parent=31 // pred_check
          %p223 = pneg %p58
        $region34: #{tpu_custom_call.1} parent=31 // pred_check_branch
          %225 = sbr.rel (%p223) target = $region36
        $region35: #{tpu_custom_call.1} parent=31 // pred_region
          %226 = dma.done %s219, 2048
        $region36: #{tpu_custom_call.1} parent=31 // pred_fallthru
          _
        %s227 = sand.u32 %s23, 1
        %s228 = scalar_lea.sflag [#allocation6], %s227
        %s229 = sand.u32 %s73, 1
        %s230 = smul.addr %s229, 128
        %s231 = scalar_lea.vmem [#allocation5], %s230
        // Predicated region
        $region37: #{tpu_custom_call.1} parent=31 // pred_check
          %p232 = pneg %p86
        $region38: #{tpu_custom_call.1} parent=31 // pred_check_branch
          %234 = sbr.rel (%p232) target = $region40
        $region39: #{tpu_custom_call.1} parent=31 // pred_region
          %235 = dma.done %s228, 2048
        $region40: #{tpu_custom_call.1} parent=31 // pred_fallthru
          _
        // Predicated region
        $region41: #{tpu_custom_call.1} parent=31 // pred_check
          %p236 = pneg %p107
        $region42: #{tpu_custom_call.1} parent=31 // pred_check_branch
          %238 = sbr.rel (%p236) target = $region44
        $region43: #{tpu_custom_call.1} parent=31 // pred_region
          %239 = dma.done [#allocation6], 4352
        $region44: #{tpu_custom_call.1} parent=31 // pred_fallthru
          _
        %s240 = sand.u32 %s45, 1
        %s241 = scalar_lea.sflag [#allocation3], %s240
        %s242 = sand.u32 %s45, 1
        %s243 = smul.addr %s242, 128
        %s244 = scalar_lea.vmem [#allocation2], %s243
        %p245 = pneg %p58
        %p246 = pneg %p55
        %s247 = sand.u32 %s23, 1
        %s248 = scalar_lea.sflag [#allocation6], %s247
        %s249 = sand.u32 %s73, 1
        %s250 = smul.addr %s249, 128
        %s251 = scalar_lea.vmem [#allocation5], %s250
        %p252 = pneg %p86
        %p253 = pneg %p83
        %p254 = pneg %p107
        %p255 = pneg %p104
        %p256 = pneg %p135
        %p257 = pneg %p132
        %s258 = sand.u32 %s122, 1
        %s259 = scalar_lea.sflag [#allocation4], %s258
        %s260 = sand.u32 %s122, 1
        %s261 = scalar_lea.vmem [#allocation8], %s260
        %v263 = vld [vmem:[%s222] sm:$0xf]
        %v264 = vld [vmem:[%s222 + $0x4] sm:$0xf]
        %v265 = vld [vmem:[%s222 + $0x8] sm:$0xf]
        %v266 = vld [vmem:[%s222 + $0xc] sm:$0xf]
        %v267 = vld [vmem:[%s222 + $0x10] sm:$0xf]
        %v268 = vld [vmem:[%s222 + $0x14] sm:$0xf]
        %v269 = vld [vmem:[%s222 + $0x18] sm:$0xf]
        %v270 = vld [vmem:[%s222 + $0x1c] sm:$0xf]
        %v271 = vld [vmem:[%s222 + $0x20] sm:$0xf]
        %v272 = vld [vmem:[%s222 + $0x24] sm:$0xf]
        %v273 = vld [vmem:[%s222 + $0x28] sm:$0xf]
        %v274 = vld [vmem:[%s222 + $0x2c] sm:$0xf]
        %v275 = vld [vmem:[%s222 + $0x30] sm:$0xf]
        %v276 = vld [vmem:[%s222 + $0x34] sm:$0xf]
        %v277 = vld [vmem:[%s222 + $0x38] sm:$0xf]
        %v278 = vld [vmem:[%s222 + $0x3c] sm:$0xf]
        %v279 = vld [vmem:[%s222 + $0x40] sm:$0xf]
        %v280 = vld [vmem:[%s222 + $0x44] sm:$0xf]
        %v281 = vld [vmem:[%s222 + $0x48] sm:$0xf]
        %v282 = vld [vmem:[%s222 + $0x4c] sm:$0xf]
        %v283 = vld [vmem:[%s222 + $0x50] sm:$0xf]
        %v284 = vld [vmem:[%s222 + $0x54] sm:$0xf]
        %v285 = vld [vmem:[%s222 + $0x58] sm:$0xf]
        %v286 = vld [vmem:[%s222 + $0x5c] sm:$0xf]
        %v287 = vld [vmem:[%s222 + $0x60] sm:$0xf]
        %v288 = vld [vmem:[%s222 + $0x64] sm:$0xf]
        %v289 = vld [vmem:[%s222 + $0x68] sm:$0xf]
        %v290 = vld [vmem:[%s222 + $0x6c] sm:$0xf]
        %v291 = vld [vmem:[%s222 + $0x70] sm:$0xf]
        %v292 = vld [vmem:[%s222 + $0x74] sm:$0xf]
        %v293 = vld [vmem:[%s222 + $0x78] sm:$0xf]
        %v294 = vld [vmem:[%s222 + $0x7c] sm:$0xf]
        %v295 = vld [vmem:[%s231] sm:$0xf]
        %v296 = vld [vmem:[%s231 + $0x4] sm:$0xf]
        %v297 = vld [vmem:[%s231 + $0x8] sm:$0xf]
        %v298 = vld [vmem:[%s231 + $0xc] sm:$0xf]
        %v299 = vld [vmem:[%s231 + $0x10] sm:$0xf]
        %v300 = vld [vmem:[%s231 + $0x14] sm:$0xf]
        %v301 = vld [vmem:[%s231 + $0x18] sm:$0xf]
        %v302 = vld [vmem:[%s231 + $0x1c] sm:$0xf]
        %v303 = vld [vmem:[%s231 + $0x20] sm:$0xf]
        %v304 = vld [vmem:[%s231 + $0x24] sm:$0xf]
        %v305 = vld [vmem:[%s231 + $0x28] sm:$0xf]
        %v306 = vld [vmem:[%s231 + $0x2c] sm:$0xf]
        %v307 = vld [vmem:[%s231 + $0x30] sm:$0xf]
        %v308 = vld [vmem:[%s231 + $0x34] sm:$0xf]
        %v309 = vld [vmem:[%s231 + $0x38] sm:$0xf]
        %v310 = vld [vmem:[%s231 + $0x3c] sm:$0xf]
        %v311 = vld [vmem:[%s231 + $0x40] sm:$0xf]
        %v312 = vld [vmem:[%s231 + $0x44] sm:$0xf]
        %v313 = vld [vmem:[%s231 + $0x48] sm:$0xf]
        %v314 = vld [vmem:[%s231 + $0x4c] sm:$0xf]
        %v315 = vld [vmem:[%s231 + $0x50] sm:$0xf]
        %v316 = vld [vmem:[%s231 + $0x54] sm:$0xf]
        %v317 = vld [vmem:[%s231 + $0x58] sm:$0xf]
        %v318 = vld [vmem:[%s231 + $0x5c] sm:$0xf]
        %v319 = vld [vmem:[%s231 + $0x60] sm:$0xf]
        %v320 = vld [vmem:[%s231 + $0x64] sm:$0xf]
        %v321 = vld [vmem:[%s231 + $0x68] sm:$0xf]
        %v322 = vld [vmem:[%s231 + $0x6c] sm:$0xf]
        %v323 = vld [vmem:[%s231 + $0x70] sm:$0xf]
        %v324 = vld [vmem:[%s231 + $0x74] sm:$0xf]
        %v325 = vld [vmem:[%s231 + $0x78] sm:$0xf]
        %v326 = vld [vmem:[%s231 + $0x7c] sm:$0xf]
        %v327 = vld [vmem:[#allocation7] sm:$0xff]
        %v328 = vld [vmem:[#allocation7 + $0x8] sm:$0xff]
        %v329 = vld [vmem:[#allocation7 + $0x10] sm:$0xff]
        %v330 = vld [vmem:[#allocation7 + $0x18] sm:$0xff]
        %v331 = vld [vmem:[#allocation7 + $0x20] sm:$0xff]
        %v332 = vld [vmem:[#allocation7 + $0x28] sm:$0xff]
        %v333 = vld [vmem:[#allocation7 + $0x30] sm:$0xff]
        %v334 = vld [vmem:[#allocation7 + $0x38] sm:$0xff]
        %v335 = vld [vmem:[#allocation7 + $0x40] sm:$0xff]
        %v336 = vld [vmem:[#allocation7 + $0x48] sm:$0xff]
        %v337 = vld [vmem:[#allocation7 + $0x50] sm:$0xff]
        %v338 = vld [vmem:[#allocation7 + $0x58] sm:$0xff]
        %v339 = vld [vmem:[#allocation7 + $0x60] sm:$0xff]
        %v340 = vld [vmem:[#allocation7 + $0x68] sm:$0xff]
        %v341 = vld [vmem:[#allocation7 + $0x70] sm:$0xff]
        %v342 = vld [vmem:[#allocation7 + $0x78] sm:$0xff]
        %v343 = vld [vmem:[#allocation7 + $0x80] sm:$0xff]
        %v344 = vld [vmem:[#allocation7 + $0x88] sm:$0xff]
        %v345 = vld [vmem:[#allocation7 + $0x90] sm:$0xff]
        %v346 = vld [vmem:[#allocation7 + $0x98] sm:$0xff]
        %v347 = vld [vmem:[#allocation7 + $0xa0] sm:$0xff]
        %v348 = vld [vmem:[#allocation7 + $0xa8] sm:$0xff]
        %v349 = vld [vmem:[#allocation7 + $0xb0] sm:$0xff]
        %v350 = vld [vmem:[#allocation7 + $0xb8] sm:$0xff]
        %v351 = vld [vmem:[#allocation7 + $0xc0] sm:$0xff]
        %v352 = vld [vmem:[#allocation7 + $0xc8] sm:$0xff]
        %v353 = vld [vmem:[#allocation7 + $0xd0] sm:$0xff]
        %v354 = vld [vmem:[#allocation7 + $0xd8] sm:$0xff]
        %v355 = vld [vmem:[#allocation7 + $0xe0] sm:$0xff]
        %v356 = vld [vmem:[#allocation7 + $0xe8] sm:$0xff]
        %v357 = vld [vmem:[#allocation7 + $0xf0] sm:$0xff]
        %v358 = vld [vmem:[#allocation7 + $0xf8] sm:$0xff]
        %v359 = vld [vmem:[#allocation7 + $0x100] sm:$0xff]
        %v360 = vld [vmem:[#allocation7 + $0x108] sm:$0xff]
        %v395 = vunpack.c.l.b16 %v327
        %v396 = vunpack.c.h.b16 %v327
        %v397 = vunpack.c.l.b16 %v328
        %v398 = vunpack.c.h.b16 %v328
        %v399 = vunpack.c.l.b16 %v329
        %v400 = vunpack.c.h.b16 %v329
        %v401 = vunpack.c.l.b16 %v330
        %v402 = vunpack.c.h.b16 %v330
        %v403 = vunpack.c.l.b16 %v331
        %v404 = vunpack.c.h.b16 %v331
        %v405 = vunpack.c.l.b16 %v332
        %v406 = vunpack.c.h.b16 %v332
        %v407 = vunpack.c.l.b16 %v333
        %v408 = vunpack.c.h.b16 %v333
        %v409 = vunpack.c.l.b16 %v334
        %v410 = vunpack.c.h.b16 %v334
        %v411 = vunpack.c.l.b16 %v335
        %v412 = vunpack.c.h.b16 %v335
        %v413 = vunpack.c.l.b16 %v336
        %v414 = vunpack.c.h.b16 %v336
        %v415 = vunpack.c.l.b16 %v337
        %v416 = vunpack.c.h.b16 %v337
        %v417 = vunpack.c.l.b16 %v338
        %v418 = vunpack.c.h.b16 %v338
        %v419 = vunpack.c.l.b16 %v339
        %v420 = vunpack.c.h.b16 %v339
        %v421 = vunpack.c.l.b16 %v340
        %v422 = vunpack.c.h.b16 %v340
        %v423 = vunpack.c.l.b16 %v341
        %v424 = vunpack.c.h.b16 %v341
        %v425 = vunpack.c.l.b16 %v342
        %v426 = vunpack.c.h.b16 %v342
        %v427 = vunpack.c.l.b16 %v343
        %v428 = vunpack.c.h.b16 %v343
        %v429 = vunpack.c.l.b16 %v344
        %v430 = vunpack.c.h.b16 %v344
        %v431 = vunpack.c.l.b16 %v345
        %v432 = vunpack.c.h.b16 %v345
        %v433 = vunpack.c.l.b16 %v346
        %v434 = vunpack.c.h.b16 %v346
        %v435 = vunpack.c.l.b16 %v347
        %v436 = vunpack.c.h.b16 %v347
        %v437 = vunpack.c.l.b16 %v348
        %v438 = vunpack.c.h.b16 %v348
        %v439 = vunpack.c.l.b16 %v349
        %v440 = vunpack.c.h.b16 %v349
        %v441 = vunpack.c.l.b16 %v350
        %v442 = vunpack.c.h.b16 %v350
        %v443 = vunpack.c.l.b16 %v351
        %v444 = vunpack.c.h.b16 %v351
        %v445 = vunpack.c.l.b16 %v352
        %v446 = vunpack.c.h.b16 %v352
        %v447 = vunpack.c.l.b16 %v353
        %v448 = vunpack.c.h.b16 %v353
        %v449 = vunpack.c.l.b16 %v354
        %v450 = vunpack.c.h.b16 %v354
        %v451 = vunpack.c.l.b16 %v355
        %v452 = vunpack.c.h.b16 %v355
        %v453 = vunpack.c.l.b16 %v356
        %v454 = vunpack.c.h.b16 %v356
        %v455 = vunpack.c.l.b16 %v357
        %v456 = vunpack.c.h.b16 %v357
        %v457 = vunpack.c.l.b16 %v358
        %v458 = vunpack.c.h.b16 %v358
        %v459 = vunpack.c.l.b16 %v359
        %v460 = vunpack.c.h.b16 %v359
        %v461 = vunpack.c.l.b16 %v360
        %v462 = vunpack.c.h.b16 %v360
        %v463 = vpack.c.b16 %v397, %v395
        %v464 = vpack.c.b16 %v398, %v396
        %v465 = vpack.c.b16 %v401, %v399
        %v466 = vpack.c.b16 %v402, %v400
        %v467 = vpack.c.b16 %v405, %v403
        %v468 = vpack.c.b16 %v406, %v404
        %v469 = vpack.c.b16 %v409, %v407
        %v470 = vpack.c.b16 %v410, %v408
        %v471 = vpack.c.b16 %v413, %v411
        %v472 = vpack.c.b16 %v414, %v412
        %v473 = vpack.c.b16 %v417, %v415
        %v474 = vpack.c.b16 %v418, %v416
        %v475 = vpack.c.b16 %v421, %v419
        %v476 = vpack.c.b16 %v422, %v420
        %v477 = vpack.c.b16 %v425, %v423
        %v478 = vpack.c.b16 %v426, %v424
        %v479 = vpack.c.b16 %v429, %v427
        %v480 = vpack.c.b16 %v430, %v428
        %v481 = vpack.c.b16 %v433, %v431
        %v482 = vpack.c.b16 %v434, %v432
        %v483 = vpack.c.b16 %v437, %v435
        %v484 = vpack.c.b16 %v438, %v436
        %v485 = vpack.c.b16 %v441, %v439
        %v486 = vpack.c.b16 %v442, %v440
        %v487 = vpack.c.b16 %v445, %v443
        %v488 = vpack.c.b16 %v446, %v444
        %v489 = vpack.c.b16 %v449, %v447
        %v490 = vpack.c.b16 %v450, %v448
        %v491 = vpack.c.b16 %v453, %v451
        %v492 = vpack.c.b16 %v454, %v452
        %v493 = vpack.c.b16 %v457, %v455
        %v494 = vpack.c.b16 %v458, %v456
        %v495 = vpack.c.b16 %v461, %v459
        %v496 = vpack.c.b16 %v462, %v460
        %v563 = vunpack.c.l.b16 %v263
        %v564 = vunpack.c.l.b16 %v264
        %v565 = vunpack.c.l.b16 %v265
        %v566 = vunpack.c.l.b16 %v266
        %v567 = vunpack.c.l.b16 %v267
        %v568 = vunpack.c.l.b16 %v268
        %v569 = vunpack.c.l.b16 %v269
        %v570 = vunpack.c.l.b16 %v270
        %v571 = vunpack.c.l.b16 %v271
        %v572 = vunpack.c.l.b16 %v272
        %v573 = vunpack.c.l.b16 %v273
        %v574 = vunpack.c.l.b16 %v274
        %v575 = vunpack.c.l.b16 %v275
        %v576 = vunpack.c.l.b16 %v276
        %v577 = vunpack.c.l.b16 %v277
        %v578 = vunpack.c.l.b16 %v278
        %v579 = vunpack.c.l.b16 %v279
        %v580 = vunpack.c.l.b16 %v280
        %v581 = vunpack.c.l.b16 %v281
        %v582 = vunpack.c.l.b16 %v282
        %v583 = vunpack.c.l.b16 %v283
        %v584 = vunpack.c.l.b16 %v284
        %v585 = vunpack.c.l.b16 %v285
        %v586 = vunpack.c.l.b16 %v286
        %v587 = vunpack.c.l.b16 %v287
        %v588 = vunpack.c.l.b16 %v288
        %v589 = vunpack.c.l.b16 %v289
        %v590 = vunpack.c.l.b16 %v290
        %v591 = vunpack.c.l.b16 %v291
        %v592 = vunpack.c.l.b16 %v292
        %v593 = vunpack.c.l.b16 %v293
        %v594 = vunpack.c.l.b16 %v294
        %v595 = vpack.c.b16 %v564, %v563
        %v596 = vpack.c.b16 %v566, %v565
        %v597 = vpack.c.b16 %v568, %v567
        %v598 = vpack.c.b16 %v570, %v569
        %v599 = vpack.c.b16 %v572, %v571
        %v600 = vpack.c.b16 %v574, %v573
        %v601 = vpack.c.b16 %v576, %v575
        %v602 = vpack.c.b16 %v578, %v577
        %v603 = vpack.c.b16 %v580, %v579
        %v604 = vpack.c.b16 %v582, %v581
        %v605 = vpack.c.b16 %v584, %v583
        %v606 = vpack.c.b16 %v586, %v585
        %v607 = vpack.c.b16 %v588, %v587
        %v608 = vpack.c.b16 %v590, %v589
        %v609 = vpack.c.b16 %v592, %v591
        %v610 = vpack.c.b16 %v594, %v593
        %627 = vmatprep.subr.bf16.mxu0 0
        %628 = vmatpush1.bf16.msra.mxu0 %v602
        %629 = vmatprep.subr.bf16.mxu0 0
        %630 = vmatpush1.bf16.msra.mxu0 %v601
        %631 = vmatprep.subr.bf16.mxu0 0
        %632 = vmatpush1.bf16.msra.mxu0 %v600
        %633 = vmatprep.subr.bf16.mxu0 0
        %634 = vmatpush1.bf16.msra.mxu0 %v599
        %635 = vmatprep.subr.bf16.mxu0 0
        %636 = vmatpush1.bf16.msra.mxu0 %v598
        %637 = vmatprep.subr.bf16.mxu0 0
        %638 = vmatpush1.bf16.msra.mxu0 %v597
        %639 = vmatprep.subr.bf16.mxu0 0
        %640 = vmatpush1.bf16.msra.mxu0 %v596
        %641 = vmatprep.subr.bf16.mxu0 0
        %642 = vmatpush1.bf16.msra.mxu0 %v595
        %643 = vmatprep.subr.bf16.mxu0 0
        %644 = vmatpush2.bf16.msra.mxu0 %v610
        %645 = vmatprep.subr.bf16.mxu0 0
        %646 = vmatpush2.bf16.msra.mxu0 %v609
        %647 = vmatprep.subr.bf16.mxu0 0
        %648 = vmatpush2.bf16.msra.mxu0 %v608
        %649 = vmatprep.subr.bf16.mxu0 0
        %650 = vmatpush2.bf16.msra.mxu0 %v607
        %651 = vmatprep.subr.bf16.mxu0 0
        %652 = vmatpush2.bf16.msra.mxu0 %v606
        %653 = vmatprep.subr.bf16.mxu0 0
        %654 = vmatpush2.bf16.msra.mxu0 %v605
        %655 = vmatprep.subr.bf16.mxu0 0
        %656 = vmatpush2.bf16.msra.mxu0 %v604
        %657 = vmatprep.subr.bf16.mxu0 0
        %658 = vmatpush2.bf16.msra.mxu0 %v603
        %659 = vmatprep.mubr.bf16.mxu0 %v464
        %660 = vmatmul.mubr.bf16.gmra.mxu0 %v463
        %v661 = vpop.f32.mrf.mxu0
        %v662 = vadd.f32 0.0, %v661
        %v663 = vpop.f32.mrf.mxu0
        %v664 = vpop.f32.mrf.mxu0
        %v665 = vadd.f32 0.0, %v664
        %v666 = vpop.f32.mrf.mxu0
        %667 = vmatprep.mubr.bf16.mxu0 %v466
        %668 = vmatmul.mubr.bf16.gmra.mxu0 %v465
        %v669 = vpop.f32.mrf.mxu0
        %v670 = vadd.f32 0.0, %v669
        %v671 = vpop.f32.mrf.mxu0
        %v672 = vpop.f32.mrf.mxu0
        %v673 = vadd.f32 0.0, %v672
        %v674 = vpop.f32.mrf.mxu0
        %675 = vmatprep.mubr.bf16.mxu0 %v468
        %676 = vmatmul.mubr.bf16.gmra.mxu0 %v467
        %v677 = vpop.f32.mrf.mxu0
        %v678 = vadd.f32 0.0, %v677
        %v679 = vpop.f32.mrf.mxu0
        %v680 = vpop.f32.mrf.mxu0
        %v681 = vadd.f32 0.0, %v680
        %v682 = vpop.f32.mrf.mxu0
        %683 = vmatprep.mubr.bf16.mxu0 %v470
        %684 = vmatmul.mubr.bf16.gmra.mxu0 %v469
        %v685 = vpop.f32.mrf.mxu0
        %v686 = vadd.f32 0.0, %v685
        %v687 = vpop.f32.mrf.mxu0
        %v688 = vpop.f32.mrf.mxu0
        %v689 = vadd.f32 0.0, %v688
        %v690 = vpop.f32.mrf.mxu0
        %691 = vmatprep.mubr.bf16.mxu0 %v472
        %692 = vmatmul.mubr.bf16.gmra.mxu0 %v471
        %v693 = vpop.f32.mrf.mxu0
        %v694 = vadd.f32 0.0, %v693
        %v695 = vpop.f32.mrf.mxu0
        %v696 = vpop.f32.mrf.mxu0
        %v697 = vadd.f32 0.0, %v696
        %v698 = vpop.f32.mrf.mxu0
        %699 = vmatprep.mubr.bf16.mxu0 %v474
        %700 = vmatmul.mubr.bf16.gmra.mxu0 %v473
        %v701 = vpop.f32.mrf.mxu0
        %v702 = vadd.f32 0.0, %v701
        %v703 = vpop.f32.mrf.mxu0
        %v704 = vpop.f32.mrf.mxu0
        %v705 = vadd.f32 0.0, %v704
        %v706 = vpop.f32.mrf.mxu0
        %707 = vmatprep.mubr.bf16.mxu0 %v476
        %708 = vmatmul.mubr.bf16.gmra.mxu0 %v475
        %v709 = vpop.f32.mrf.mxu0
        %v710 = vadd.f32 0.0, %v709
        %v711 = vpop.f32.mrf.mxu0
        %v712 = vpop.f32.mrf.mxu0
        %v713 = vadd.f32 0.0, %v712
        %v714 = vpop.f32.mrf.mxu0
        %715 = vmatprep.mubr.bf16.mxu0 %v478
        %716 = vmatmul.mubr.bf16.gmra.mxu0 %v477
        %v717 = vpop.f32.mrf.mxu0
        %v718 = vadd.f32 0.0, %v717
        %v719 = vpop.f32.mrf.mxu0
        %v720 = vpop.f32.mrf.mxu0
        %v721 = vadd.f32 0.0, %v720
        %v722 = vpop.f32.mrf.mxu0
        %723 = vmatprep.mubr.bf16.mxu0 %v480
        %724 = vmatmul.mubr.bf16.gmra.mxu0 %v479
        %v725 = vpop.f32.mrf.mxu0
        %v726 = vadd.f32 0.0, %v725
        %v727 = vpop.f32.mrf.mxu0
        %v728 = vpop.f32.mrf.mxu0
        %v729 = vadd.f32 0.0, %v728
        %v730 = vpop.f32.mrf.mxu0
        %731 = vmatprep.mubr.bf16.mxu0 %v482
        %732 = vmatmul.mubr.bf16.gmra.mxu0 %v481
        %v733 = vpop.f32.mrf.mxu0
        %v734 = vadd.f32 0.0, %v733
        %v735 = vpop.f32.mrf.mxu0
        %v736 = vpop.f32.mrf.mxu0
        %v737 = vadd.f32 0.0, %v736
        %v738 = vpop.f32.mrf.mxu0
        %739 = vmatprep.mubr.bf16.mxu0 %v484
        %740 = vmatmul.mubr.bf16.gmra.mxu0 %v483
        %v741 = vpop.f32.mrf.mxu0
        %v742 = vadd.f32 0.0, %v741
        %v743 = vpop.f32.mrf.mxu0
        %v744 = vpop.f32.mrf.mxu0
        %v745 = vadd.f32 0.0, %v744
        %v746 = vpop.f32.mrf.mxu0
        %747 = vmatprep.mubr.bf16.mxu0 %v486
        %748 = vmatmul.mubr.bf16.gmra.mxu0 %v485
        %v749 = vpop.f32.mrf.mxu0
        %v750 = vadd.f32 0.0, %v749
        %v751 = vpop.f32.mrf.mxu0
        %v752 = vpop.f32.mrf.mxu0
        %v753 = vadd.f32 0.0, %v752
        %v754 = vpop.f32.mrf.mxu0
        %755 = vmatprep.mubr.bf16.mxu0 %v488
        %756 = vmatmul.mubr.bf16.gmra.mxu0 %v487
        %v757 = vpop.f32.mrf.mxu0
        %v758 = vadd.f32 0.0, %v757
        %v759 = vpop.f32.mrf.mxu0
        %v760 = vpop.f32.mrf.mxu0
        %v761 = vadd.f32 0.0, %v760
        %v762 = vpop.f32.mrf.mxu0
        %763 = vmatprep.mubr.bf16.mxu0 %v490
        %764 = vmatmul.mubr.bf16.gmra.mxu0 %v489
        %v765 = vpop.f32.mrf.mxu0
        %v766 = vadd.f32 0.0, %v765
        %v767 = vpop.f32.mrf.mxu0
        %v768 = vpop.f32.mrf.mxu0
        %v769 = vadd.f32 0.0, %v768
        %v770 = vpop.f32.mrf.mxu0
        %771 = vmatprep.mubr.bf16.mxu0 %v492
        %772 = vmatmul.mubr.bf16.gmra.mxu0 %v491
        %v773 = vpop.f32.mrf.mxu0
        %v774 = vadd.f32 0.0, %v773
        %v775 = vpop.f32.mrf.mxu0
        %v776 = vpop.f32.mrf.mxu0
        %v777 = vadd.f32 0.0, %v776
        %v778 = vpop.f32.mrf.mxu0
        %779 = vmatprep.mubr.bf16.mxu0 %v494
        %780 = vmatmul.mubr.bf16.gmra.mxu0 %v493
        %v781 = vpop.f32.mrf.mxu0
        %v782 = vadd.f32 0.0, %v781
        %v783 = vpop.f32.mrf.mxu0
        %v784 = vpop.f32.mrf.mxu0
        %v785 = vadd.f32 0.0, %v784
        %v786 = vpop.f32.mrf.mxu0
        %787 = vmatprep.mubr.bf16.mxu0 %v496
        %788 = vmatmul.mubr.bf16.gmra.mxu0 %v495
        %v789 = vpop.f32.mrf.mxu0
        %v790 = vadd.f32 0.0, %v789
        %v791 = vpop.f32.mrf.mxu0
        %v792 = vpop.f32.mrf.mxu0
        %v793 = vpop.f32.mrf.mxu0
        %794 = vdwg.mxu0
        %v827 = vunpack.c.l.b16 %v295
        %v828 = vunpack.c.l.b16 %v296
        %v829 = vunpack.c.l.b16 %v297
        %v830 = vunpack.c.l.b16 %v298
        %v831 = vunpack.c.l.b16 %v299
        %v832 = vunpack.c.l.b16 %v300
        %v833 = vunpack.c.l.b16 %v301
        %v834 = vunpack.c.l.b16 %v302
        %v835 = vunpack.c.l.b16 %v303
        %v836 = vunpack.c.l.b16 %v304
        %v837 = vunpack.c.l.b16 %v305
        %v838 = vunpack.c.l.b16 %v306
        %v839 = vunpack.c.l.b16 %v307
        %v840 = vunpack.c.l.b16 %v308
        %v841 = vunpack.c.l.b16 %v309
        %v842 = vunpack.c.l.b16 %v310
        %v843 = vunpack.c.l.b16 %v311
        %v844 = vunpack.c.l.b16 %v312
        %v845 = vunpack.c.l.b16 %v313
        %v846 = vunpack.c.l.b16 %v314
        %v847 = vunpack.c.l.b16 %v315
        %v848 = vunpack.c.l.b16 %v316
        %v849 = vunpack.c.l.b16 %v317
        %v850 = vunpack.c.l.b16 %v318
        %v851 = vunpack.c.l.b16 %v319
        %v852 = vunpack.c.l.b16 %v320
        %v853 = vunpack.c.l.b16 %v321
        %v854 = vunpack.c.l.b16 %v322
        %v855 = vunpack.c.l.b16 %v323
        %v856 = vunpack.c.l.b16 %v324
        %v857 = vunpack.c.l.b16 %v325
        %v858 = vunpack.c.l.b16 %v326
        %v859 = vpack.c.b16 %v828, %v827
        %v860 = vpack.c.b16 %v830, %v829
        %v861 = vpack.c.b16 %v832, %v831
        %v862 = vpack.c.b16 %v834, %v833
        %v863 = vpack.c.b16 %v836, %v835
        %v864 = vpack.c.b16 %v838, %v837
        %v865 = vpack.c.b16 %v840, %v839
        %v866 = vpack.c.b16 %v842, %v841
        %v867 = vpack.c.b16 %v844, %v843
        %v868 = vpack.c.b16 %v846, %v845
        %v869 = vpack.c.b16 %v848, %v847
        %v870 = vpack.c.b16 %v850, %v849
        %v871 = vpack.c.b16 %v852, %v851
        %v872 = vpack.c.b16 %v854, %v853
        %v873 = vpack.c.b16 %v856, %v855
        %v874 = vpack.c.b16 %v858, %v857
        %891 = vmatprep.subr.bf16.mxu0 0
        %892 = vmatpush1.bf16.msra.mxu0 %v866
        %893 = vmatprep.subr.bf16.mxu0 0
        %894 = vmatpush1.bf16.msra.mxu0 %v865
        %895 = vmatprep.subr.bf16.mxu0 0
        %896 = vmatpush1.bf16.msra.mxu0 %v864
        %897 = vmatprep.subr.bf16.mxu0 0
        %898 = vmatpush1.bf16.msra.mxu0 %v863
        %899 = vmatprep.subr.bf16.mxu0 0
        %900 = vmatpush1.bf16.msra.mxu0 %v862
        %901 = vmatprep.subr.bf16.mxu0 0
        %902 = vmatpush1.bf16.msra.mxu0 %v861
        %903 = vmatprep.subr.bf16.mxu0 0
        %904 = vmatpush1.bf16.msra.mxu0 %v860
        %905 = vmatprep.subr.bf16.mxu0 0
        %906 = vmatpush1.bf16.msra.mxu0 %v859
        %907 = vmatprep.subr.bf16.mxu0 0
        %908 = vmatpush2.bf16.msra.mxu0 %v874
        %909 = vmatprep.subr.bf16.mxu0 0
        %910 = vmatpush2.bf16.msra.mxu0 %v873
        %911 = vmatprep.subr.bf16.mxu0 0
        %912 = vmatpush2.bf16.msra.mxu0 %v872
        %913 = vmatprep.subr.bf16.mxu0 0
        %914 = vmatpush2.bf16.msra.mxu0 %v871
        %915 = vmatprep.subr.bf16.mxu0 0
        %916 = vmatpush2.bf16.msra.mxu0 %v870
        %917 = vmatprep.subr.bf16.mxu0 0
        %918 = vmatpush2.bf16.msra.mxu0 %v869
        %919 = vmatprep.subr.bf16.mxu0 0
        %920 = vmatpush2.bf16.msra.mxu0 %v868
        %921 = vmatprep.subr.bf16.mxu0 0
        %922 = vmatpush2.bf16.msra.mxu0 %v867
        %923 = vmatprep.mubr.bf16.mxu0 %v464
        %924 = vmatmul.mubr.bf16.gmra.mxu0 %v463
        %v925 = vpop.f32.mrf.mxu0
        %v926 = vadd.f32 0.0, %v925
        %v927 = vpop.f32.mrf.mxu0
        %v928 = vpop.f32.mrf.mxu0
        %v929 = vadd.f32 0.0, %v928
        %v930 = vpop.f32.mrf.mxu0
        %931 = vmatprep.mubr.bf16.mxu0 %v466
        %932 = vmatmul.mubr.bf16.gmra.mxu0 %v465
        %v933 = vpop.f32.mrf.mxu0
        %v934 = vadd.f32 0.0, %v933
        %v935 = vpop.f32.mrf.mxu0
        %v936 = vpop.f32.mrf.mxu0
        %v937 = vadd.f32 0.0, %v936
        %v938 = vpop.f32.mrf.mxu0
        %939 = vmatprep.mubr.bf16.mxu0 %v468
        %940 = vmatmul.mubr.bf16.gmra.mxu0 %v467
        %v941 = vpop.f32.mrf.mxu0
        %v942 = vadd.f32 0.0, %v941
        %v943 = vpop.f32.mrf.mxu0
        %v944 = vpop.f32.mrf.mxu0
        %v945 = vadd.f32 0.0, %v944
        %v946 = vpop.f32.mrf.mxu0
        %947 = vmatprep.mubr.bf16.mxu0 %v470
        %948 = vmatmul.mubr.bf16.gmra.mxu0 %v469
        %v949 = vpop.f32.mrf.mxu0
        %v950 = vadd.f32 0.0, %v949
        %v951 = vpop.f32.mrf.mxu0
        %v952 = vpop.f32.mrf.mxu0
        %v953 = vadd.f32 0.0, %v952
        %v954 = vpop.f32.mrf.mxu0
        %955 = vmatprep.mubr.bf16.mxu0 %v472
        %956 = vmatmul.mubr.bf16.gmra.mxu0 %v471
        %v957 = vpop.f32.mrf.mxu0
        %v958 = vadd.f32 0.0, %v957
        %v959 = vpop.f32.mrf.mxu0
        %v960 = vpop.f32.mrf.mxu0
        %v961 = vadd.f32 0.0, %v960
        %v962 = vpop.f32.mrf.mxu0
        %963 = vmatprep.mubr.bf16.mxu0 %v474
        %964 = vmatmul.mubr.bf16.gmra.mxu0 %v473
        %v965 = vpop.f32.mrf.mxu0
        %v966 = vadd.f32 0.0, %v965
        %v967 = vpop.f32.mrf.mxu0
        %v968 = vpop.f32.mrf.mxu0
        %v969 = vadd.f32 0.0, %v968
        %v970 = vpop.f32.mrf.mxu0
        %971 = vmatprep.mubr.bf16.mxu0 %v476
        %972 = vmatmul.mubr.bf16.gmra.mxu0 %v475
        %v973 = vpop.f32.mrf.mxu0
        %v974 = vadd.f32 0.0, %v973
        %v975 = vpop.f32.mrf.mxu0
        %v976 = vpop.f32.mrf.mxu0
        %v977 = vadd.f32 0.0, %v976
        %v978 = vpop.f32.mrf.mxu0
        %979 = vmatprep.mubr.bf16.mxu0 %v478
        %980 = vmatmul.mubr.bf16.gmra.mxu0 %v477
        %v981 = vpop.f32.mrf.mxu0
        %v982 = vadd.f32 0.0, %v981
        %v983 = vpop.f32.mrf.mxu0
        %v984 = vpop.f32.mrf.mxu0
        %v985 = vadd.f32 0.0, %v984
        %v986 = vpop.f32.mrf.mxu0
        %987 = vmatprep.mubr.bf16.mxu0 %v480
        %988 = vmatmul.mubr.bf16.gmra.mxu0 %v479
        %v989 = vpop.f32.mrf.mxu0
        %v990 = vadd.f32 0.0, %v989
        %v991 = vpop.f32.mrf.mxu0
        %v992 = vpop.f32.mrf.mxu0
        %v993 = vadd.f32 0.0, %v992
        %v994 = vpop.f32.mrf.mxu0
        %995 = vmatprep.mubr.bf16.mxu0 %v482
        %996 = vmatmul.mubr.bf16.gmra.mxu0 %v481
        %v997 = vpop.f32.mrf.mxu0
        %v998 = vadd.f32 0.0, %v997
        %v999 = vpop.f32.mrf.mxu0
        %v1000 = vpop.f32.mrf.mxu0
        %v1001 = vadd.f32 0.0, %v1000
        %v1002 = vpop.f32.mrf.mxu0
        %1003 = vmatprep.mubr.bf16.mxu0 %v484
        %1004 = vmatmul.mubr.bf16.gmra.mxu0 %v483
        %v1005 = vpop.f32.mrf.mxu0
        %v1006 = vadd.f32 0.0, %v1005
        %v1007 = vpop.f32.mrf.mxu0
        %v1008 = vpop.f32.mrf.mxu0
        %v1009 = vadd.f32 0.0, %v1008
        %v1010 = vpop.f32.mrf.mxu0
        %1011 = vmatprep.mubr.bf16.mxu0 %v486
        %1012 = vmatmul.mubr.bf16.gmra.mxu0 %v485
        %v1013 = vpop.f32.mrf.mxu0
        %v1014 = vadd.f32 0.0, %v1013
        %v1015 = vpop.f32.mrf.mxu0
        %v1016 = vpop.f32.mrf.mxu0
        %v1017 = vadd.f32 0.0, %v1016
        %v1018 = vpop.f32.mrf.mxu0
        %1019 = vmatprep.mubr.bf16.mxu0 %v488
        %1020 = vmatmul.mubr.bf16.gmra.mxu0 %v487
        %v1021 = vpop.f32.mrf.mxu0
        %v1022 = vadd.f32 0.0, %v1021
        %v1023 = vpop.f32.mrf.mxu0
        %v1024 = vpop.f32.mrf.mxu0
        %v1025 = vadd.f32 0.0, %v1024
        %v1026 = vpop.f32.mrf.mxu0
        %1027 = vmatprep.mubr.bf16.mxu0 %v490
        %1028 = vmatmul.mubr.bf16.gmra.mxu0 %v489
        %v1029 = vpop.f32.mrf.mxu0
        %v1030 = vadd.f32 0.0, %v1029
        %v1031 = vpop.f32.mrf.mxu0
        %v1032 = vpop.f32.mrf.mxu0
        %v1033 = vadd.f32 0.0, %v1032
        %v1034 = vpop.f32.mrf.mxu0
        %1035 = vmatprep.mubr.bf16.mxu0 %v492
        %1036 = vmatmul.mubr.bf16.gmra.mxu0 %v491
        %v1037 = vpop.f32.mrf.mxu0
        %v1038 = vadd.f32 0.0, %v1037
        %v1039 = vpop.f32.mrf.mxu0
        %v1040 = vpop.f32.mrf.mxu0
        %v1041 = vadd.f32 0.0, %v1040
        %v1042 = vpop.f32.mrf.mxu0
        %1043 = vmatprep.mubr.bf16.mxu0 %v494
        %1044 = vmatmul.mubr.bf16.gmra.mxu0 %v493
        %v1045 = vpop.f32.mrf.mxu0
        %v1046 = vadd.f32 0.0, %v1045
        %v1047 = vpop.f32.mrf.mxu0
        %v1048 = vpop.f32.mrf.mxu0
        %v1049 = vadd.f32 0.0, %v1048
        %v1050 = vpop.f32.mrf.mxu0
        %1051 = vmatprep.mubr.bf16.mxu0 %v496
        %1052 = vmatmul.mubr.bf16.gmra.mxu0 %v495
        %v1053 = vpop.f32.mrf.mxu0
        %v1054 = vadd.f32 0.0, %v1053
        %v1055 = vpop.f32.mrf.mxu0
        %v1056 = vpop.f32.mrf.mxu0
        %v1057 = vpop.f32.mrf.mxu0
        %1058 = vdwg.mxu0
        %v1059 = vmul.f32 %v662, %v662
        %v1060 = vmul.f32 %v665, %v665
        %v1061 = vmul.f32 %v670, %v670
        %v1062 = vmul.f32 %v673, %v673
        %v1063 = vmul.f32 %v678, %v678
        %v1064 = vmul.f32 %v681, %v681
        %v1065 = vmul.f32 %v686, %v686
        %v1066 = vmul.f32 %v689, %v689
        %v1067 = vmul.f32 %v694, %v694
        %v1068 = vmul.f32 %v697, %v697
        %v1069 = vmul.f32 %v702, %v702
        %v1070 = vmul.f32 %v705, %v705
        %v1071 = vmul.f32 %v710, %v710
        %v1072 = vmul.f32 %v713, %v713
        %v1073 = vmul.f32 %v718, %v718
        %v1074 = vmul.f32 %v721, %v721
        %v1075 = vmul.f32 %v726, %v726
        %v1076 = vmul.f32 %v729, %v729
        %v1077 = vmul.f32 %v734, %v734
        %v1078 = vmul.f32 %v737, %v737
        %v1079 = vmul.f32 %v742, %v742
        %v1080 = vmul.f32 %v745, %v745
        %v1081 = vmul.f32 %v750, %v750
        %v1082 = vmul.f32 %v753, %v753
        %v1083 = vmul.f32 %v758, %v758
        %v1084 = vmul.f32 %v761, %v761
        %v1085 = vmul.f32 %v766, %v766
        %v1086 = vmul.f32 %v769, %v769
        %v1087 = vmul.f32 %v774, %v774
        %v1088 = vmul.f32 %v777, %v777
        %v1089 = vmul.f32 %v782, %v782
        %v1090 = vmul.f32 %v785, %v785
        %v1091 = vadd.f32 %v1059, %v1075
        %v1092 = vadd.f32 %v1060, %v1076
        %v1093 = vadd.f32 %v1061, %v1077
        %v1094 = vadd.f32 %v1062, %v1078
        %v1095 = vadd.f32 %v1063, %v1079
        %v1096 = vadd.f32 %v1064, %v1080
        %v1097 = vadd.f32 %v1065, %v1081
        %v1098 = vadd.f32 %v1066, %v1082
        %v1099 = vadd.f32 %v1067, %v1083
        %v1100 = vadd.f32 %v1068, %v1084
        %v1101 = vadd.f32 %v1069, %v1085
        %v1102 = vadd.f32 %v1070, %v1086
        %v1103 = vadd.f32 %v1071, %v1087
        %v1104 = vadd.f32 %v1072, %v1088
        %v1105 = vadd.f32 %v1073, %v1089
        %v1106 = vadd.f32 %v1074, %v1090
        %v1107 = vmul.f32 %v926, %v926
        %v1108 = vmul.f32 %v929, %v929
        %v1109 = vmul.f32 %v934, %v934
        %v1110 = vmul.f32 %v937, %v937
        %v1111 = vmul.f32 %v942, %v942
        %v1112 = vmul.f32 %v945, %v945
        %v1113 = vmul.f32 %v950, %v950
        %v1114 = vmul.f32 %v953, %v953
        %v1115 = vmul.f32 %v958, %v958
        %v1116 = vmul.f32 %v961, %v961
        %v1117 = vmul.f32 %v966, %v966
        %v1118 = vmul.f32 %v969, %v969
        %v1119 = vmul.f32 %v974, %v974
        %v1120 = vmul.f32 %v977, %v977
        %v1121 = vmul.f32 %v982, %v982
        %v1122 = vmul.f32 %v985, %v985
        %v1123 = vmul.f32 %v990, %v990
        %v1124 = vmul.f32 %v993, %v993
        %v1125 = vmul.f32 %v998, %v998
        %v1126 = vmul.f32 %v1001, %v1001
        %v1127 = vmul.f32 %v1006, %v1006
        %v1128 = vmul.f32 %v1009, %v1009
        %v1129 = vmul.f32 %v1014, %v1014
        %v1130 = vmul.f32 %v1017, %v1017
        %v1131 = vmul.f32 %v1022, %v1022
        %v1132 = vmul.f32 %v1025, %v1025
        %v1133 = vmul.f32 %v1030, %v1030
        %v1134 = vmul.f32 %v1033, %v1033
        %v1135 = vmul.f32 %v1038, %v1038
        %v1136 = vmul.f32 %v1041, %v1041
        %v1137 = vmul.f32 %v1046, %v1046
        %v1138 = vmul.f32 %v1049, %v1049
        %v1139 = vadd.f32 %v1107, %v1123
        %v1140 = vadd.f32 %v1108, %v1124
        %v1141 = vadd.f32 %v1109, %v1125
        %v1142 = vadd.f32 %v1110, %v1126
        %v1143 = vadd.f32 %v1111, %v1127
        %v1144 = vadd.f32 %v1112, %v1128
        %v1145 = vadd.f32 %v1113, %v1129
        %v1146 = vadd.f32 %v1114, %v1130
        %v1147 = vadd.f32 %v1115, %v1131
        %v1148 = vadd.f32 %v1116, %v1132
        %v1149 = vadd.f32 %v1117, %v1133
        %v1150 = vadd.f32 %v1118, %v1134
        %v1151 = vadd.f32 %v1119, %v1135
        %v1152 = vadd.f32 %v1120, %v1136
        %v1153 = vadd.f32 %v1121, %v1137
        %v1154 = vadd.f32 %v1122, %v1138
        %v1155 = vmax.f32 %v1091, 1.1920929e-07
        %v1156 = vmax.f32 %v1092, 1.1920929e-07
        %v1157 = vmax.f32 %v1093, 1.1920929e-07
        %v1158 = vmax.f32 %v1094, 1.1920929e-07
        %v1159 = vmax.f32 %v1095, 1.1920929e-07
        %v1160 = vmax.f32 %v1096, 1.1920929e-07
        %v1161 = vmax.f32 %v1097, 1.1920929e-07
        %v1162 = vmax.f32 %v1098, 1.1920929e-07
        %v1163 = vmax.f32 %v1099, 1.1920929e-07
        %v1164 = vmax.f32 %v1100, 1.1920929e-07
        %v1165 = vmax.f32 %v1101, 1.1920929e-07
        %v1166 = vmax.f32 %v1102, 1.1920929e-07
        %v1167 = vmax.f32 %v1103, 1.1920929e-07
        %v1168 = vmax.f32 %v1104, 1.1920929e-07
        %v1169 = vmax.f32 %v1105, 1.1920929e-07
        %v1170 = vmax.f32 %v1106, 1.1920929e-07
        %v1171 = vlog2.pop %v1155
        %v1172 = vmul.f32 %v1171, 0.6931472
        %v1173 = vlog2.pop %v1156
        %v1174 = vmul.f32 %v1173, 0.6931472
        %v1175 = vlog2.pop %v1157
        %v1176 = vmul.f32 %v1175, 0.6931472
        %v1177 = vlog2.pop %v1158
        %v1178 = vmul.f32 %v1177, 0.6931472
        %v1179 = vlog2.pop %v1159
        %v1180 = vmul.f32 %v1179, 0.6931472
        %v1181 = vlog2.pop %v1160
        %v1182 = vmul.f32 %v1181, 0.6931472
        %v1183 = vlog2.pop %v1161
        %v1184 = vmul.f32 %v1183, 0.6931472
        %v1185 = vlog2.pop %v1162
        %v1186 = vmul.f32 %v1185, 0.6931472
        %v1187 = vlog2.pop %v1163
        %v1188 = vmul.f32 %v1187, 0.6931472
        %v1189 = vlog2.pop %v1164
        %v1190 = vmul.f32 %v1189, 0.6931472
        %v1191 = vlog2.pop %v1165
        %v1192 = vmul.f32 %v1191, 0.6931472
        %v1193 = vlog2.pop %v1166
        %v1194 = vmul.f32 %v1193, 0.6931472
        %v1195 = vlog2.pop %v1167
        %v1196 = vmul.f32 %v1195, 0.6931472
        %v1197 = vlog2.pop %v1168
        %v1198 = vmul.f32 %v1197, 0.6931472
        %v1199 = vlog2.pop %v1169
        %v1200 = vmul.f32 %v1199, 0.6931472
        %v1201 = vlog2.pop %v1170
        %v1202 = vmul.f32 %v1201, 0.6931472
        %v1203 = vmul.f32 %v1172, 0.4342945
        %v1204 = vmul.f32 %v1174, 0.4342945
        %v1205 = vmul.f32 %v1176, 0.4342945
        %v1206 = vmul.f32 %v1178, 0.4342945
        %v1207 = vmul.f32 %v1180, 0.4342945
        %v1208 = vmul.f32 %v1182, 0.4342945
        %v1209 = vmul.f32 %v1184, 0.4342945
        %v1210 = vmul.f32 %v1186, 0.4342945
        %v1211 = vmul.f32 %v1188, 0.4342945
        %v1212 = vmul.f32 %v1190, 0.4342945
        %v1213 = vmul.f32 %v1192, 0.4342945
        %v1214 = vmul.f32 %v1194, 0.4342945
        %v1215 = vmul.f32 %v1196, 0.4342945
        %v1216 = vmul.f32 %v1198, 0.4342945
        %v1217 = vmul.f32 %v1200, 0.4342945
        %v1218 = vmul.f32 %v1202, 0.4342945
        %v1219 = vmax.f32 %v1139, 1.1920929e-07
        %v1220 = vmax.f32 %v1140, 1.1920929e-07
        %v1221 = vmax.f32 %v1141, 1.1920929e-07
        %v1222 = vmax.f32 %v1142, 1.1920929e-07
        %v1223 = vmax.f32 %v1143, 1.1920929e-07
        %v1224 = vmax.f32 %v1144, 1.1920929e-07
        %v1225 = vmax.f32 %v1145, 1.1920929e-07
        %v1226 = vmax.f32 %v1146, 1.1920929e-07
        %v1227 = vmax.f32 %v1147, 1.1920929e-07
        %v1228 = vmax.f32 %v1148, 1.1920929e-07
        %v1229 = vmax.f32 %v1149, 1.1920929e-07
        %v1230 = vmax.f32 %v1150, 1.1920929e-07
        %v1231 = vmax.f32 %v1151, 1.1920929e-07
        %v1232 = vmax.f32 %v1152, 1.1920929e-07
        %v1233 = vmax.f32 %v1153, 1.1920929e-07
        %v1234 = vmax.f32 %v1154, 1.1920929e-07
        %v1235 = vlog2.pop %v1219
        %v1236 = vmul.f32 %v1235, 0.6931472
        %v1237 = vlog2.pop %v1220
        %v1238 = vmul.f32 %v1237, 0.6931472
        %v1239 = vlog2.pop %v1221
        %v1240 = vmul.f32 %v1239, 0.6931472
        %v1241 = vlog2.pop %v1222
        %v1242 = vmul.f32 %v1241, 0.6931472
        %v1243 = vlog2.pop %v1223
        %v1244 = vmul.f32 %v1243, 0.6931472
        %v1245 = vlog2.pop %v1224
        %v1246 = vmul.f32 %v1245, 0.6931472
        %v1247 = vlog2.pop %v1225
        %v1248 = vmul.f32 %v1247, 0.6931472
        %v1249 = vlog2.pop %v1226
        %v1250 = vmul.f32 %v1249, 0.6931472
        %v1251 = vlog2.pop %v1227
        %v1252 = vmul.f32 %v1251, 0.6931472
        %v1253 = vlog2.pop %v1228
        %v1254 = vmul.f32 %v1253, 0.6931472
        %v1255 = vlog2.pop %v1229
        %v1256 = vmul.f32 %v1255, 0.6931472
        %v1257 = vlog2.pop %v1230
        %v1258 = vmul.f32 %v1257, 0.6931472
        %v1259 = vlog2.pop %v1231
        %v1260 = vmul.f32 %v1259, 0.6931472
        %v1261 = vlog2.pop %v1232
        %v1262 = vmul.f32 %v1261, 0.6931472
        %v1263 = vlog2.pop %v1233
        %v1264 = vmul.f32 %v1263, 0.6931472
        %v1265 = vlog2.pop %v1234
        %v1266 = vmul.f32 %v1265, 0.6931472
        %v1267 = vmul.f32 %v1236, 0.4342945
        %v1268 = vmul.f32 %v1238, 0.4342945
        %v1269 = vmul.f32 %v1240, 0.4342945
        %v1270 = vmul.f32 %v1242, 0.4342945
        %v1271 = vmul.f32 %v1244, 0.4342945
        %v1272 = vmul.f32 %v1246, 0.4342945
        %v1273 = vmul.f32 %v1248, 0.4342945
        %v1274 = vmul.f32 %v1250, 0.4342945
        %v1275 = vmul.f32 %v1252, 0.4342945
        %v1276 = vmul.f32 %v1254, 0.4342945
        %v1277 = vmul.f32 %v1256, 0.4342945
        %v1278 = vmul.f32 %v1258, 0.4342945
        %v1279 = vmul.f32 %v1260, 0.4342945
        %v1280 = vmul.f32 %v1262, 0.4342945
        %v1281 = vmul.f32 %v1264, 0.4342945
        %v1282 = vmul.f32 %v1266, 0.4342945
        %v1283 = vsub.f32 %v1203, %v1267
        %v1284 = vsub.f32 %v1204, %v1268
        %v1285 = vsub.f32 %v1205, %v1269
        %v1286 = vsub.f32 %v1206, %v1270
        %v1287 = vsub.f32 %v1207, %v1271
        %v1288 = vsub.f32 %v1208, %v1272
        %v1289 = vsub.f32 %v1209, %v1273
        %v1290 = vsub.f32 %v1210, %v1274
        %v1291 = vsub.f32 %v1211, %v1275
        %v1292 = vsub.f32 %v1212, %v1276
        %v1293 = vsub.f32 %v1213, %v1277
        %v1294 = vsub.f32 %v1214, %v1278
        %v1295 = vsub.f32 %v1215, %v1279
        %v1296 = vsub.f32 %v1216, %v1280
        %v1297 = vsub.f32 %v1217, %v1281
        %v1298 = vsub.f32 %v1218, %v1282
        %v1299 = vmul.f32 %v790, %v790
        %v1300 = vmax.f32 %v1299, 1.1920929e-07
        %v1301 = vlog2.pop %v1300
        %v1302 = vmul.f32 %v1301, 0.6931472
        %v1303 = vmul.f32 %v1302, 0.4342945
        %v1304 = vmul.f32 %v1054, %v1054
        %v1305 = vmax.f32 %v1304, 1.1920929e-07
        %v1306 = vlog2.pop %v1305
        %v1307 = vmul.f32 %v1306, 0.6931472
        %v1308 = vmul.f32 %v1307, 0.4342945
        %v1309 = vsub.f32 %v1303, %v1308
        %v1310 = vmul.f32 %v1283, %v1283
        %v1311 = vmul.f32 %v1284, %v1284
        %v1312 = vmul.f32 %v1285, %v1285
        %v1313 = vmul.f32 %v1286, %v1286
        %v1314 = vmul.f32 %v1287, %v1287
        %v1315 = vmul.f32 %v1288, %v1288
        %v1316 = vmul.f32 %v1289, %v1289
        %v1317 = vmul.f32 %v1290, %v1290
        %v1318 = vmul.f32 %v1291, %v1291
        %v1319 = vmul.f32 %v1292, %v1292
        %v1320 = vmul.f32 %v1293, %v1293
        %v1321 = vmul.f32 %v1294, %v1294
        %v1322 = vmul.f32 %v1295, %v1295
        %v1323 = vmul.f32 %v1296, %v1296
        %v1324 = vmul.f32 %v1297, %v1297
        %v1325 = vmul.f32 %v1298, %v1298
        %v1326 = vadd.f32 %v1310, %v1311
        %v1327 = vadd.f32 %v1326, %v1312
        %v1328 = vadd.f32 %v1327, %v1313
        %v1329 = vadd.f32 %v1328, %v1314
        %v1330 = vadd.f32 %v1329, %v1315
        %v1331 = vadd.f32 %v1330, %v1316
        %v1332 = vadd.f32 %v1331, %v1317
        %v1333 = vadd.f32 %v1332, %v1318
        %v1334 = vadd.f32 %v1333, %v1319
        %v1335 = vadd.f32 %v1334, %v1320
        %v1336 = vadd.f32 %v1335, %v1321
        %v1337 = vadd.f32 %v1336, %v1322
        %v1338 = vadd.f32 %v1337, %v1323
        %v1339 = vadd.f32 %v1338, %v1324
        %v1340 = vadd.f32 %v1339, %v1325
        %v1341 = vrot.slane %v1340, 4
        %v1342 = vadd.f32 %v1340, %v1341
        %v1343 = vrot.slane %v1342, 2
        %v1344 = vadd.f32 %v1342, %v1343
        %v1345 = vrot.slane %v1344, 1
        %v1346 = vadd.f32 %v1344, %v1345
        %v1347 = vmul.f32 %v1309, %v1309
        %v1348 = vadd.f32 %v1346, %v1347
        %v1349 = vmul.f32 %v1348, 0.007751938
        %v1350 = vrsqrt.pop %v1349
        %v1351 = vmul.f32 %v1349, %v1350
        %vm1352 = vcmp.eq.f32.partialorder %v1349, inf
        %v1353 = vsel %vm1352, %v1349, %v1351
        %vm1354 = vcmp.eq.f32.partialorder %v1349, 0.0
        %v1355 = vand.u32 %v1349, 2147483648
        %v1356 = vsel %vm1354, %v1355, %v1353
        %1357 = vst [vmem:[%s261] sm:$0x1] %v1356
        %s1358 = sand.u32 %s122, 1
        %s1359 = scalar_lea.sflag [#allocation4], %s1358
        %s1360 = sand.u32 %s122, 1
        %s1361 = scalar_lea.vmem [#allocation8], %s1360
        // Predicated region
        $region45: #{tpu_custom_call.1} parent=31 // pred_check
          %p1362 = pneg %p132
        $region46: #{tpu_custom_call.1} parent=31 // pred_check_branch
          %1364 = sbr.rel (%p1362) target = $region48
        $region47: #{tpu_custom_call.1} parent=31 // pred_region
          %s1366 = ssub.s32 16, 16
          %1367 = vsyncadd %s1359, %s1366
          %s1368 = sadd.s32 %s28, %s27
          %s1369 = smul.addr %s1368, 16
          %s1370 = scalar_lea.hbm %s3, %s1369
          %s1372 = sshll.u32 %s1361, 4
          %s1373 = int_to_ptr.vmem [resolvable:$true] %s1372
          %1375 = dma.vmem_to_hbm [thread:$0]  %s1373, 16, %s1370, %s1359
        $region48: #{tpu_custom_call.1} parent=31 // pred_fallthru
          _
      $region32: #{tpu_custom_call.1} parent=5 // pred_fallthru
        _
      %p1376 = scmp.le.s32.totalorder 2, %s18
      // Predicated region
      $region49: #{tpu_custom_call.1} parent=5 // pred_check
        %p1377 = pneg %p1376
      $region50: #{tpu_custom_call.1} parent=5 // pred_check_branch
        %1379 = sbr.rel (%p1377) target = $region52
      $region51: #{tpu_custom_call.1} parent=5 // pred_region
        %s1380 = ssub.s32 %s18, 2
        // Predicated region
        $region53: #{tpu_custom_call.1} parent=51 // pred_check
          %p1381 = pneg %p138
        $region54: #{tpu_custom_call.1} parent=51 // pred_check_branch
          %1383 = sbr.rel (%p1381) target = $region56
        $region55: #{tpu_custom_call.1} parent=51 // pred_region
          %s1384 = sand.u32 %s123, 1
          %s1385 = scalar_lea.sflag [#allocation4], %s1384
          %s1386 = sand.u32 %s123, 1
          %s1387 = scalar_lea.vmem [#allocation8], %s1386
          %1388 = dma.done %s1385, 16
        $region56: #{tpu_custom_call.1} parent=51 // pred_fallthru
          _
      $region52: #{tpu_custom_call.1} parent=5 // pred_fallthru
        _
    $region6: #{tpu_custom_call.1} parent=1 // loop_footer
      %s22 = sadd.s32 1, %s18
    $region7: #{tpu_custom_call.1} parent=1 // loop_footer_branch
      %17 = sbr.rel target = $region3
    $region8: #{tpu_custom_call.1} parent=1 // loop_exit
      _
    %1389 = vsyncpa [#allocation3], 1
    %s1390 = scalar_lea.sflag [#allocation3], 1
    %1391 = vsyncpa %s1390, 1
    %1392 = vsyncpa [#allocation6], 1
    %s1393 = scalar_lea.sflag [#allocation6], 1
    %1394 = vsyncpa %s1393, 1
    %1395 = vsyncpa [#allocation4], 1
    %s1396 = scalar_lea.sflag [#allocation4], 1
    %1397 = vsyncpa %s1396, 1

</llo_original>
